<compile_context>
chip_gen: v6e
topology: v6e:2x2x1
jax: 0.10.0
libtpu: 0.0.40
codegen_flags: <defaults>
</compile_context>

<pallas_src>
import functools

import jax
import jax.numpy as jnp
from jax.experimental import pallas as pl
from jax.experimental.pallas import tpu as pltpu

F32 = jnp.float32


def _round_up(x, m):
    return (x + m - 1) // m * m


def _smem_spec():
    return pl.BlockSpec(memory_space=pltpu.MemorySpace.SMEM)


# -----------------------------------------------------------------------------
# Fused kernel: seg NLL (tiled scan) + label NLL (step 0) + feature-transform
# regularizer & weighted combine (last step).
# -----------------------------------------------------------------------------
def _fused_loss_kernel(seg_lp_ref, seg_tg_ref, lab_lp_ref, lab_tg_ref, tf_ref,
                       loss_ref, seg_ref, lab_ref, *,
                       seg_rows, lab_rows, nbatch, d, weight, scale):
    i = pl.program_id(0)

    # ---- step 0: init accumulator + tiny label-NLL (B x K) -----------------
    @pl.when(i == 0)
    def _init():
        seg_ref[0, 0] = jnp.float32(0.0)
        lp = lab_lp_ref[...].astype(F32)                   # (K, B) lane-dense
        tg = lab_tg_ref[...]                               # (1, B) int32
        k, b = lp.shape
        cls = jax.lax.broadcasted_iota(jnp.int32, (k, b), 0)
        picked = jnp.where(cls == tg, lp, 0.0)             # one-hot gather
        lab_ref[0, 0] = -jnp.sum(picked) * (1.0 / lab_rows)

    # ---- every step: seg-NLL partial over a lane-dense (C, tr) tile ---------
    lp = seg_lp_ref[...].astype(F32)                       # (C, tr) lane-dense
    tg = seg_tg_ref[...]                                   # (1, tr) int32
    c, tr = lp.shape
    cls = jax.lax.broadcasted_iota(jnp.int32, (c, tr), 0)
    picked = jnp.where(cls == tg, lp, 0.0)
    # Padded columns carry logp == 0 and target == 0, so they add exactly 0;
    # no explicit validity mask is required (wrapper zero-pads).
    seg_ref[0, 0] += -jnp.sum(picked) * (1.0 / seg_rows)

    # ---- last step: feature-transform regularizer + combine ----------------
    @pl.when(i == pl.num_programs(0) - 1)
    def _finalize():
        acc = jnp.float32(0.0)
        for b in range(nbatch):                            # static unroll
            t = tf_ref[b]                                  # (d, d), native dtype
            t32 = t.astype(F32)
            # T @ T^T on the MXU (contract last dims of both; no transpose)
            m = jax.lax.dot_general(t, t, (((1,), (1,)), ((), ())),
                                    preferred_element_type=F32)
            # ||T T^T - I||_F^2 = sum(m*m) - 2*trace(T T^T) + d
            fro2 = jnp.sum(m * m) - 2.0 * jnp.sum(t32 * t32) + jnp.float32(d)
            acc = acc + jnp.sqrt(jnp.maximum(fro2, 0.0))
        mat = acc * (1.0 / nbatch)
        loss_ref[0, 0] = (weight * seg_ref[0, 0]
                          + (1.0 - weight) * lab_ref[0, 0]
                          + scale * mat)


# -----------------------------------------------------------------------------
# PointNetLoss.forward
# -----------------------------------------------------------------------------
def pointnet_loss(labels_pred, label, seg_pred, seg, trans_feat,
                  *, weight=1.0, mat_diff_loss_scale=0.001, max_tile_rows=8192):
    """labels_pred: (B, K) log-probs; label: (B,) int;
    seg_pred: (..., C) log-probs with classes LAST (flattened internally);
    seg: matching int targets; trans_feat: (B, d, d)."""
    c = seg_pred.shape[-1]
    seg_lp = seg_pred.reshape(-1, c)
    seg_tg = seg.reshape(-1).astype(jnp.int32)
    r = seg_lp.shape[0]

    # Row tile (lane dim after transpose): multiple of 128, up to max_tile_rows.
    tr = min(max_tile_rows, _round_up(r, 128))
    r_pad = _round_up(r, tr)

    # Lane-dense layouts: classes on sublanes, rows on lanes.  Zero padding of
    # both logp and targets keeps padded rows at exactly zero contribution.
    seg_lp_t = seg_lp.T                                     # (C, R)
    if r_pad != r:
        seg_lp_t = jnp.pad(seg_lp_t, ((0, 0), (0, r_pad - r)))
        seg_tg = jnp.pad(seg_tg, ((0, r_pad - r),))
    seg_tg2 = seg_tg.reshape(1, r_pad)

    b_lab, k = labels_pred.shape
    lab_lp_t = labels_pred.T                                # (K, B)
    lab_tg2 = label.astype(jnp.int32).reshape(1, b_lab)

    nb, d, _ = trans_feat.shape
    n_tiles = r_pad // tr

    kernel = functools.partial(
        _fused_loss_kernel, seg_rows=r, lab_rows=b_lab, nbatch=nb, d=d,
        weight=float(weight), scale=float(mat_diff_loss_scale))

    loss, seg_loss, lab_loss = pl.pallas_call(
        kernel,
        grid=(n_tiles,),
        in_specs=[
            pl.BlockSpec((c, tr), lambda i: (0, i)),        # seg log-probs^T tile
            pl.BlockSpec((1, tr), lambda i: (0, i)),        # seg targets (lane-dense)
            pl.BlockSpec((k, b_lab), lambda i: (0, 0)),     # labels log-probs^T (resident)
            pl.BlockSpec((1, b_lab), lambda i: (0, 0)),     # label targets (resident)
            pl.BlockSpec((nb, d, d), lambda i: (0, 0, 0)),  # trans_feat (resident)
        ],
        out_specs=(_smem_spec(), _smem_spec(), _smem_spec()),
        out_shape=(jax.ShapeDtypeStruct((1, 1), F32),
                   jax.ShapeDtypeStruct((1, 1), F32),
                   jax.ShapeDtypeStruct((1, 1), F32)),
        compiler_params=pltpu.CompilerParams(
            dimension_semantics=("arbitrary",)),
    )(seg_lp_t, seg_tg2, lab_lp_t, lab_tg2, trans_feat)

    return loss[0, 0], seg_loss[0, 0], lab_loss[0, 0]


if __name__ == "__main__":
    B, N = 4, 128
    SEG_CLASSES, NUM_CLASS, D = 13, 16, 64

    key = jax.random.PRNGKey(0)
    k1, k2, k3, k4, k5 = jax.random.split(key, 5)

    labels_pred = jax.nn.log_softmax(
        jax.random.normal(k1, (B, NUM_CLASS), F32), axis=-1)
    label = jax.random.randint(k2, (B,), 0, NUM_CLASS, dtype=jnp.int32)
    seg_pred = jax.nn.log_softmax(
        jax.random.normal(k3, (B, N, SEG_CLASSES), F32), axis=-1)
    seg = jax.random.randint(k4, (B, N), 0, SEG_CLASSES, dtype=jnp.int32)
    trans_feat = 0.1 * jax.random.normal(k5, (B, D, D), F32)

    fwd = jax.jit(pointnet_loss)
    loss, seg_loss, label_loss = fwd(labels_pred, label, seg_pred, seg, trans_feat)
    jax.block_until_ready((loss, seg_loss, label_loss))

    # Pure-JAX reference (same math as the PyTorch module).
    def _ref(labels_pred, label, seg_pred, seg, trans_feat,
             weight=1.0, scale=0.001):
        sp = seg_pred.reshape(-1, seg_pred.shape[-1])
        st = seg.reshape(-1)
        seg_l = -jnp.mean(sp[jnp.arange(sp.shape[0]), st])
        lab_l = -jnp.mean(labels_pred[jnp.arange(labels_pred.shape[0]), label])
        d = trans_feat.shape[1]
        m = jnp.matmul(trans_feat, jnp.transpose(trans_feat, (0, 2, 1))) \
            - jnp.eye(d, dtype=F32)
        mat = jnp.mean(jnp.sqrt(jnp.sum(m * m, axis=(1, 2))))
        return (weight * seg_l + (1.0 - weight) * lab_l + scale * mat,
                seg_l, lab_l)

    r_loss, r_seg, r_lab = _ref(labels_pred, label, seg_pred, seg, trans_feat)
    assert bool(jnp.allclose(seg_loss, r_seg, rtol=1e-4, atol=1e-5)), (seg_loss, r_seg)
    assert bool(jnp.allclose(label_loss, r_lab, rtol=1e-4, atol=1e-5)), (label_loss, r_lab)
    assert bool(jnp.allclose(loss, r_loss, rtol=1e-4, atol=1e-5)), (loss, r_loss)
    print("KERNEL_OK")
</pallas_src>

<mosaic_0001>
module attributes {stable_mosaic.version = 11 : i64} {
  func.func @_fused_loss_kernel(%arg0: i32, %arg1: memref<13x512xf32, #tpu.memory_space<vmem>>, %arg2: memref<1x512xi32, #tpu.memory_space<vmem>>, %arg3: memref<16x4xf32, #tpu.memory_space<vmem>>, %arg4: memref<1x4xi32, #tpu.memory_space<vmem>>, %arg5: memref<4x64x64xf32, #tpu.memory_space<vmem>>, %arg6: memref<1x1xf32, #tpu.memory_space<smem>>, %arg7: memref<1x1xf32, #tpu.memory_space<smem>>, %arg8: memref<1x1xf32, #tpu.memory_space<smem>>) attributes {dimension_semantics = [#tpu.dimension_semantics<arbitrary>], iteration_bounds = array<i64: 1>, scalar_prefetch = 0 : i64, scratch_operands = 0 : i64, tpu.core_type = #tpu.core_type<tc>, window_params = [{transform_indices = @transform_0, window_bounds = array<i64: 13, 512>}, {transform_indices = @transform_1, window_bounds = array<i64: 1, 512>}, {pipeline_mode = #tpu.pipeline_mode<synchronous>, transform_indices = @transform_2, window_bounds = array<i64: 16, 4>}, {pipeline_mode = #tpu.pipeline_mode<synchronous>, transform_indices = @transform_3, window_bounds = array<i64: 1, 4>}, {pipeline_mode = #tpu.pipeline_mode<synchronous>, transform_indices = @transform_4, window_bounds = array<i64: 4, 64, 64>}, {transform_indices = @transform_5, window_bounds = array<i64: 1, 1>}, {transform_indices = @transform_6, window_bounds = array<i64: 1, 1>}, {transform_indices = @transform_7, window_bounds = array<i64: 1, 1>}]} {
    %c0_i32 = arith.constant 0 : i32
    %0 = arith.cmpi eq, %arg0, %c0_i32 : i32
    %1 = arith.extui %0 : i1 to i32
    %c0_i32_0 = arith.constant 0 : i32
    %2 = arith.cmpi ne, %1, %c0_i32_0 : i32
    scf.if %2 {
      %cst_13 = arith.constant 0.000000e+00 : f32
      %c0_14 = arith.constant 0 : index
      %c0_15 = arith.constant 0 : index
      %22 = memref.load %arg7[%c0_14, %c0_15] : memref<1x1xf32, #tpu.memory_space<smem>>
      memref.store %cst_13, %arg7[%c0_14, %c0_15] : memref<1x1xf32, #tpu.memory_space<smem>>
      %c0_16 = arith.constant 0 : index
      %c0_17 = arith.constant 0 : index
      %23 = vector.load %arg3[%c0_16, %c0_17] : memref<16x4xf32, #tpu.memory_space<vmem>>, vector<16x4xf32>
      %c0_18 = arith.constant 0 : index
      %c0_19 = arith.constant 0 : index
      %24 = vector.load %arg4[%c0_18, %c0_19] : memref<1x4xi32, #tpu.memory_space<vmem>>, vector<1x4xi32>
      %25 = tpu.iota {dimensions = array<i32: 0>} : vector<16x4xi32>
      %26 = vector.broadcast %24 : vector<1x4xi32> to vector<16x4xi32>
      %27 = arith.cmpi eq, %25, %26 : vector<16x4xi32>
      %cst_20 = arith.constant 0.000000e+00 : f32
      %28 = vector.broadcast %cst_20 : f32 to vector<16x4xf32>
      %29 = arith.select %27, %23, %28 : vector<16x4xi1>, vector<16x4xf32>
      %30 = vector.shape_cast %29 : vector<16x4xf32> to vector<1x16x4xf32>
      %cst_21 = arith.constant dense<0.000000e+00> : vector<1xf32>
      %31 = vector.multi_reduction <add>, %30, %cst_21 [1, 2] : vector<1x16x4xf32> to vector<1xf32>
      %32 = vector.shape_cast %31 : vector<1xf32> to vector<1x1x1xf32>
      %33 = vector.extract %32[0, 0, 0] : f32 from vector<1x1x1xf32>
      %cst_22 = arith.constant 0.000000e+00 : f32
      %34 = arith.subf %cst_22, %33 : f32
      %cst_23 = arith.constant 2.500000e-01 : f32
      %35 = arith.mulf %34, %cst_23 : f32
      %c0_24 = arith.constant 0 : index
      %c0_25 = arith.constant 0 : index
      %36 = memref.load %arg8[%c0_24, %c0_25] : memref<1x1xf32, #tpu.memory_space<smem>>
      memref.store %35, %arg8[%c0_24, %c0_25] : memref<1x1xf32, #tpu.memory_space<smem>>
    } else {
    }
    %c0 = arith.constant 0 : index
    %c0_1 = arith.constant 0 : index
    %3 = vector.load %arg1[%c0, %c0_1] : memref<13x512xf32, #tpu.memory_space<vmem>>, vector<13x512xf32>
    %c0_2 = arith.constant 0 : index
    %c0_3 = arith.constant 0 : index
    %4 = vector.load %arg2[%c0_2, %c0_3] : memref<1x512xi32, #tpu.memory_space<vmem>>, vector<1x512xi32>
    %5 = tpu.iota {dimensions = array<i32: 0>} : vector<13x512xi32>
    %6 = vector.broadcast %4 : vector<1x512xi32> to vector<13x512xi32>
    %7 = arith.cmpi eq, %5, %6 : vector<13x512xi32>
    %cst = arith.constant 0.000000e+00 : f32
    %8 = vector.broadcast %cst : f32 to vector<13x512xf32>
    %9 = arith.select %7, %3, %8 : vector<13x512xi1>, vector<13x512xf32>
    %c0_4 = arith.constant 0 : index
    %c0_5 = arith.constant 0 : index
    %10 = memref.load %arg7[%c0_4, %c0_5] : memref<1x1xf32, #tpu.memory_space<smem>>
    %11 = vector.shape_cast %9 : vector<13x512xf32> to vector<1x13x512xf32>
    %cst_6 = arith.constant dense<0.000000e+00> : vector<1xf32>
    %12 = vector.multi_reduction <add>, %11, %cst_6 [1, 2] : vector<1x13x512xf32> to vector<1xf32>
    %13 = vector.shape_cast %12 : vector<1xf32> to vector<1x1x1xf32>
    %14 = vector.extract %13[0, 0, 0] : f32 from vector<1x1x1xf32>
    %cst_7 = arith.constant 0.000000e+00 : f32
    %15 = arith.subf %cst_7, %14 : f32
    %cst_8 = arith.constant 0.001953125 : f32
    %16 = arith.mulf %15, %cst_8 : f32
    %17 = arith.addf %10, %16 : f32
    %c0_9 = arith.constant 0 : index
    %c0_10 = arith.constant 0 : index
    %18 = memref.load %arg7[%c0_9, %c0_10] : memref<1x1xf32, #tpu.memory_space<smem>>
    memref.store %17, %arg7[%c0_9, %c0_10] : memref<1x1xf32, #tpu.memory_space<smem>>
    %c0_i32_11 = arith.constant 0 : i32
    %19 = arith.cmpi eq, %arg0, %c0_i32_11 : i32
    %20 = arith.extui %19 : i1 to i32
    %c0_i32_12 = arith.constant 0 : i32
    %21 = arith.cmpi ne, %20, %c0_i32_12 : i32
    scf.if %21 {
      %c0_13 = arith.constant 0 : index
      %c0_14 = arith.constant 0 : index
      %c0_15 = arith.constant 0 : index
      %22 = vector.load %arg5[%c0_13, %c0_14, %c0_15] : memref<4x64x64xf32, #tpu.memory_space<vmem>>, vector<1x64x64xf32>
      %23 = vector.shape_cast %22 : vector<1x64x64xf32> to vector<64x64xf32>
      %cst_16 = arith.constant dense<0.000000e+00> : vector<64x64xf32>
      %24 = tpu.matmul %23, %23, %cst_16 {dimension_numbers = #tpu.dot_dimension_numbers<[1], [1], [0], [0], [0, 0, 1, 0], [], []>} : vector<64x64xf32>, vector<64x64xf32>, vector<64x64xf32> -> vector<64x64xf32>
      %25 = arith.mulf %24, %24 : vector<64x64xf32>
      %26 = vector.shape_cast %25 : vector<64x64xf32> to vector<1x64x64xf32>
      %cst_17 = arith.constant dense<0.000000e+00> : vector<1xf32>
      %27 = vector.multi_reduction <add>, %26, %cst_17 [1, 2] : vector<1x64x64xf32> to vector<1xf32>
      %28 = vector.shape_cast %27 : vector<1xf32> to vector<1x1x1xf32>
      %29 = vector.extract %28[0, 0, 0] : f32 from vector<1x1x1xf32>
      %30 = arith.mulf %23, %23 : vector<64x64xf32>
      %31 = vector.shape_cast %30 : vector<64x64xf32> to vector<1x64x64xf32>
      %cst_18 = arith.constant dense<0.000000e+00> : vector<1xf32>
      %32 = vector.multi_reduction <add>, %31, %cst_18 [1, 2] : vector<1x64x64xf32> to vector<1xf32>
      %33 = vector.shape_cast %32 : vector<1xf32> to vector<1x1x1xf32>
      %34 = vector.extract %33[0, 0, 0] : f32 from vector<1x1x1xf32>
      %cst_19 = arith.constant 2.000000e+00 : f32
      %35 = arith.mulf %cst_19, %34 : f32
      %36 = arith.subf %29, %35 : f32
      %cst_20 = arith.constant 6.400000e+01 : f32
      %37 = arith.addf %36, %cst_20 : f32
      %cst_21 = arith.constant 0.000000e+00 : f32
      %38 = arith.maximumf %37, %cst_21 : f32
      %39 = math.sqrt %38 : f32
      %cst_22 = arith.constant 0.000000e+00 : f32
      %40 = arith.addf %cst_22, %39 : f32
      %c1 = arith.constant 1 : index
      %c0_23 = arith.constant 0 : index
      %c0_24 = arith.constant 0 : index
      %41 = vector.load %arg5[%c1, %c0_23, %c0_24] : memref<4x64x64xf32, #tpu.memory_space<vmem>>, vector<1x64x64xf32>
      %42 = vector.shape_cast %41 : vector<1x64x64xf32> to vector<64x64xf32>
      %cst_25 = arith.constant dense<0.000000e+00> : vector<64x64xf32>
      %43 = tpu.matmul %42, %42, %cst_25 {dimension_numbers = #tpu.dot_dimension_numbers<[1], [1], [0], [0], [0, 0, 1, 0], [], []>} : vector<64x64xf32>, vector<64x64xf32>, vector<64x64xf32> -> vector<64x64xf32>
      %44 = arith.mulf %43, %43 : vector<64x64xf32>
      %45 = vector.shape_cast %44 : vector<64x64xf32> to vector<1x64x64xf32>
      %cst_26 = arith.constant dense<0.000000e+00> : vector<1xf32>
      %46 = vector.multi_reduction <add>, %45, %cst_26 [1, 2] : vector<1x64x64xf32> to vector<1xf32>
      %47 = vector.shape_cast %46 : vector<1xf32> to vector<1x1x1xf32>
      %48 = vector.extract %47[0, 0, 0] : f32 from vector<1x1x1xf32>
      %49 = arith.mulf %42, %42 : vector<64x64xf32>
      %50 = vector.shape_cast %49 : vector<64x64xf32> to vector<1x64x64xf32>
      %cst_27 = arith.constant dense<0.000000e+00> : vector<1xf32>
      %51 = vector.multi_reduction <add>, %50, %cst_27 [1, 2] : vector<1x64x64xf32> to vector<1xf32>
      %52 = vector.shape_cast %51 : vector<1xf32> to vector<1x1x1xf32>
      %53 = vector.extract %52[0, 0, 0] : f32 from vector<1x1x1xf32>
      %cst_28 = arith.constant 2.000000e+00 : f32
      %54 = arith.mulf %cst_28, %53 : f32
      %55 = arith.subf %48, %54 : f32
      %cst_29 = arith.constant 6.400000e+01 : f32
      %56 = arith.addf %55, %cst_29 : f32
      %cst_30 = arith.constant 0.000000e+00 : f32
      %57 = arith.maximumf %56, %cst_30 : f32
      %58 = math.sqrt %57 : f32
      %59 = arith.addf %40, %58 : f32
      %c2 = arith.constant 2 : index
      %c0_31 = arith.constant 0 : index
      %c0_32 = arith.constant 0 : index
      %60 = vector.load %arg5[%c2, %c0_31, %c0_32] : memref<4x64x64xf32, #tpu.memory_space<vmem>>, vector<1x64x64xf32>
      %61 = vector.shape_cast %60 : vector<1x64x64xf32> to vector<64x64xf32>
      %cst_33 = arith.constant dense<0.000000e+00> : vector<64x64xf32>
      %62 = tpu.matmul %61, %61, %cst_33 {dimension_numbers = #tpu.dot_dimension_numbers<[1], [1], [0], [0], [0, 0, 1, 0], [], []>} : vector<64x64xf32>, vector<64x64xf32>, vector<64x64xf32> -> vector<64x64xf32>
      %63 = arith.mulf %62, %62 : vector<64x64xf32>
      %64 = vector.shape_cast %63 : vector<64x64xf32> to vector<1x64x64xf32>
      %cst_34 = arith.constant dense<0.000000e+00> : vector<1xf32>
      %65 = vector.multi_reduction <add>, %64, %cst_34 [1, 2] : vector<1x64x64xf32> to vector<1xf32>
      %66 = vector.shape_cast %65 : vector<1xf32> to vector<1x1x1xf32>
      %67 = vector.extract %66[0, 0, 0] : f32 from vector<1x1x1xf32>
      %68 = arith.mulf %61, %61 : vector<64x64xf32>
      %69 = vector.shape_cast %68 : vector<64x64xf32> to vector<1x64x64xf32>
      %cst_35 = arith.constant dense<0.000000e+00> : vector<1xf32>
      %70 = vector.multi_reduction <add>, %69, %cst_35 [1, 2] : vector<1x64x64xf32> to vector<1xf32>
      %71 = vector.shape_cast %70 : vector<1xf32> to vector<1x1x1xf32>
      %72 = vector.extract %71[0, 0, 0] : f32 from vector<1x1x1xf32>
      %cst_36 = arith.constant 2.000000e+00 : f32
      %73 = arith.mulf %cst_36, %72 : f32
      %74 = arith.subf %67, %73 : f32
      %cst_37 = arith.constant 6.400000e+01 : f32
      %75 = arith.addf %74, %cst_37 : f32
      %cst_38 = arith.constant 0.000000e+00 : f32
      %76 = arith.maximumf %75, %cst_38 : f32
      %77 = math.sqrt %76 : f32
      %78 = arith.addf %59, %77 : f32
      %c3 = arith.constant 3 : index
      %c0_39 = arith.constant 0 : index
      %c0_40 = arith.constant 0 : index
      %79 = vector.load %arg5[%c3, %c0_39, %c0_40] : memref<4x64x64xf32, #tpu.memory_space<vmem>>, vector<1x64x64xf32>
      %80 = vector.shape_cast %79 : vector<1x64x64xf32> to vector<64x64xf32>
      %cst_41 = arith.constant dense<0.000000e+00> : vector<64x64xf32>
      %81 = tpu.matmul %80, %80, %cst_41 {dimension_numbers = #tpu.dot_dimension_numbers<[1], [1], [0], [0], [0, 0, 1, 0], [], []>} : vector<64x64xf32>, vector<64x64xf32>, vector<64x64xf32> -> vector<64x64xf32>
      %82 = arith.mulf %81, %81 : vector<64x64xf32>
      %83 = vector.shape_cast %82 : vector<64x64xf32> to vector<1x64x64xf32>
      %cst_42 = arith.constant dense<0.000000e+00> : vector<1xf32>
      %84 = vector.multi_reduction <add>, %83, %cst_42 [1, 2] : vector<1x64x64xf32> to vector<1xf32>
      %85 = vector.shape_cast %84 : vector<1xf32> to vector<1x1x1xf32>
      %86 = vector.extract %85[0, 0, 0] : f32 from vector<1x1x1xf32>
      %87 = arith.mulf %80, %80 : vector<64x64xf32>
      %88 = vector.shape_cast %87 : vector<64x64xf32> to vector<1x64x64xf32>
      %cst_43 = arith.constant dense<0.000000e+00> : vector<1xf32>
      %89 = vector.multi_reduction <add>, %88, %cst_43 [1, 2] : vector<1x64x64xf32> to vector<1xf32>
      %90 = vector.shape_cast %89 : vector<1xf32> to vector<1x1x1xf32>
      %91 = vector.extract %90[0, 0, 0] : f32 from vector<1x1x1xf32>
      %cst_44 = arith.constant 2.000000e+00 : f32
      %92 = arith.mulf %cst_44, %91 : f32
      %93 = arith.subf %86, %92 : f32
      %cst_45 = arith.constant 6.400000e+01 : f32
      %94 = arith.addf %93, %cst_45 : f32
      %cst_46 = arith.constant 0.000000e+00 : f32
      %95 = arith.maximumf %94, %cst_46 : f32
      %96 = math.sqrt %95 : f32
      %97 = arith.addf %78, %96 : f32
      %cst_47 = arith.constant 2.500000e-01 : f32
      %98 = arith.mulf %97, %cst_47 : f32
      %c0_48 = arith.constant 0 : index
      %c0_49 = arith.constant 0 : index
      %99 = memref.load %arg7[%c0_48, %c0_49] : memref<1x1xf32, #tpu.memory_space<smem>>
      %cst_50 = arith.constant 1.000000e+00 : f32
      %100 = arith.mulf %cst_50, %99 : f32
      %c0_51 = arith.constant 0 : index
      %c0_52 = arith.constant 0 : index
      %101 = memref.load %arg8[%c0_51, %c0_52] : memref<1x1xf32, #tpu.memory_space<smem>>
      %cst_53 = arith.constant 0.000000e+00 : f32
      %102 = arith.mulf %cst_53, %101 : f32
      %103 = arith.addf %100, %102 : f32
      %cst_54 = arith.constant 1.000000e-03 : f32
      %104 = arith.mulf %cst_54, %98 : f32
      %105 = arith.addf %103, %104 : f32
      %c0_55 = arith.constant 0 : index
      %c0_56 = arith.constant 0 : index
      %106 = memref.load %arg6[%c0_55, %c0_56] : memref<1x1xf32, #tpu.memory_space<smem>>
      memref.store %105, %arg6[%c0_55, %c0_56] : memref<1x1xf32, #tpu.memory_space<smem>>
    } else {
    }
    return
  }
  func.func @transform_0(%arg0: i32) -> (i32, i32) {
    %c0_i32 = arith.constant 0 : i32
    %c0_i32_0 = arith.constant 0 : i32
    return %c0_i32, %arg0 : i32, i32
  }
  func.func @transform_1(%arg0: i32) -> (i32, i32) {
    %c0_i32 = arith.constant 0 : i32
    %c0_i32_0 = arith.constant 0 : i32
    return %c0_i32, %arg0 : i32, i32
  }
  func.func @transform_2(%arg0: i32) -> (i32, i32) {
    %c0_i32 = arith.constant 0 : i32
    %c0_i32_0 = arith.constant 0 : i32
    %c0_i32_1 = arith.constant 0 : i32
    return %c0_i32, %c0_i32_0 : i32, i32
  }
  func.func @transform_3(%arg0: i32) -> (i32, i32) {
    %c0_i32 = arith.constant 0 : i32
    %c0_i32_0 = arith.constant 0 : i32
    %c0_i32_1 = arith.constant 0 : i32
    return %c0_i32, %c0_i32_0 : i32, i32
  }
  func.func @transform_4(%arg0: i32) -> (i32, i32, i32) {
    %c0_i32 = arith.constant 0 : i32
    %c0_i32_0 = arith.constant 0 : i32
    %c0_i32_1 = arith.constant 0 : i32
    %c0_i32_2 = arith.constant 0 : i32
    return %c0_i32, %c0_i32_0, %c0_i32_1 : i32, i32, i32
  }
  func.func @transform_5(%arg0: i32) -> (i32, i32) {
    %c0_i32 = arith.constant 0 : i32
    %c0_i32_0 = arith.constant 0 : i32
    %c0_i32_1 = arith.constant 0 : i32
    return %c0_i32, %c0_i32_0 : i32, i32
  }
  func.func @transform_6(%arg0: i32) -> (i32, i32) {
    %c0_i32 = arith.constant 0 : i32
    %c0_i32_0 = arith.constant 0 : i32
    %c0_i32_1 = arith.constant 0 : i32
    return %c0_i32, %c0_i32_0 : i32, i32
  }
  func.func @transform_7(%arg0: i32) -> (i32, i32) {
    %c0_i32 = arith.constant 0 : i32
    %c0_i32_0 = arith.constant 0 : i32
    %c0_i32_1 = arith.constant 0 : i32
    return %c0_i32, %c0_i32_0 : i32, i32
  }
}

</mosaic_0001>

<llo_original>
// kernel: pointnet_loss.1
$region0: #{pointnet_loss.1}
  #allocation0 [shape = 'u32[]', space=smem, size = 0x4, offset = 0x4, fixed_abs, tag = 'smem constant byte address 0x4 - core index']
  #allocation1 [shape = 'u32[144,128]{1,0:T(1,128)}', space=vmem, size = 0x12000, scoped, tag = 'internal scratch']
  %s0 = inlined_call_operand.vmem [shape: f32[13,512], index: 0, kind: input, shape index: {}]
  %s1 = inlined_call_operand.vmem [shape: s32[1,512], index: 1, kind: input, shape index: {}]
  %s2 = inlined_call_operand.vmem [shape: f32[16,4], index: 2, kind: input, shape index: {}]
  %s3 = inlined_call_operand.vmem [shape: s32[1,4], index: 3, kind: input, shape index: {}]
  %s4 = inlined_call_operand.vmem [shape: f32[4,64,64], index: 4, kind: input, shape index: {}]
  %s5 = inlined_call_operand.hbm [shape: f32[1,1], index: 5, kind: output, shape index: {0}]
  %s6 = inlined_call_operand.hbm [shape: f32[1,1], index: 6, kind: output, shape index: {1}]
  %s7 = inlined_call_operand.hbm [shape: f32[1,1], index: 7, kind: output, shape index: {2}]
  %8 = xla_tuple %s5, %s6, %s7
  %s9 = sld [smem:[#allocation0]]
  $region54: #{pointnet_loss.1} parent=0
    _
  %s11 = ssub.s32 1, %s9
  %s12 = scalar_select 0, %s11, %s9
  $region1: #{pointnet_loss.1} parent=0
    #allocation2 [shape = 'u8[512]{0}', space=smem, size = 0x200, scoped, tag = 'output window, operand 0, single buffered']
    #allocation3 [shape = 's32[1]{0}', space=sflag, size = 0x4, scoped, tag = 'scoped memory for pointnet_loss.1']
    #allocation4 [shape = 'u8[512]{0}', space=smem, size = 0x200, scoped, tag = 'output window, operand 1, single buffered']
    #allocation5 [shape = 's32[1]{0}', space=sflag, size = 0x4, scoped, tag = 'scoped memory for pointnet_loss.1']
    #allocation6 [shape = 'u8[512]{0}', space=smem, size = 0x200, scoped, tag = 'output window, operand 2, single buffered']
    %13 = vsyncpa [#allocation3], 0
    %14 = vsyncpa [#allocation5], 0
    // Predicated region
    $region2: #{pointnet_loss.1} parent=1 // pred_check
      _
    $region3: #{pointnet_loss.1} parent=1 // pred_check_branch
      %16 = sbr.rel (0) target = $region5
    $region4: #{pointnet_loss.1} parent=1 // pred_region
      _
    $region5: #{pointnet_loss.1} parent=1 // pred_fallthru
      _
    // Predicated region
    $region6: #{pointnet_loss.1} parent=1 // pred_check
      _
    $region7: #{pointnet_loss.1} parent=1 // pred_check_branch
      %18 = sbr.rel (0) target = $region9
    $region8: #{pointnet_loss.1} parent=1 // pred_region
      _
    $region9: #{pointnet_loss.1} parent=1 // pred_fallthru
      _
    // Predicated region
    $region10: #{pointnet_loss.1} parent=1 // pred_check
      _
    $region11: #{pointnet_loss.1} parent=1 // pred_check_branch
      %20 = sbr.rel (0) target = $region13
    $region12: #{pointnet_loss.1} parent=1 // pred_region
      _
    $region13: #{pointnet_loss.1} parent=1 // pred_fallthru
      _
    // Predicated region
    $region14: #{pointnet_loss.1} parent=1 // pred_check
      _
    $region15: #{pointnet_loss.1} parent=1 // pred_check_branch
      %22 = sbr.rel (0) target = $region17
    $region16: #{pointnet_loss.1} parent=1 // pred_region
      _
    $region17: #{pointnet_loss.1} parent=1 // pred_fallthru
      _
    // Predicated region
    $region18: #{pointnet_loss.1} parent=1 // pred_check
      _
    $region19: #{pointnet_loss.1} parent=1 // pred_check_branch
      %24 = sbr.rel (0) target = $region21
    $region20: #{pointnet_loss.1} parent=1 // pred_region
      _
    $region21: #{pointnet_loss.1} parent=1 // pred_fallthru
      _
    %p25 = scmp.eq.s32.totalorder 0, 0
    // Predicated region
    $region22: #{pointnet_loss.1} parent=1 // pred_check
      %p26 = pneg %p25
    $region23: #{pointnet_loss.1} parent=1 // pred_check_branch
      %28 = sbr.rel (%p26) target = $region25
    $region24: #{pointnet_loss.1} parent=1 // pred_region
      %s29 = scalar_lea.smem [#allocation4], 0
      %30 = sst [smem:[%s29]] 0.0
      %v31 = vld [vmem:[%s2] sm:$0xff]
      %v32 = vld [vmem:[%s2 + $0x8] sm:$0xff]
      %v33 = vld [vmem:[%s3] sm:$0x1]
      %v34 = vlaneseq
      %v35 = vshrl.u32 %v34, 7
      %v36 = vadd.s32 %v35, 8
      %v37 = vlaneseq
      %v38 = vshrl.u32 %v37, 7
      %v39 = vsub.s32 0, %v38
      %v40 = vrot.slane %v33, %v39
      %vm41 = vcmp.eq.s32.totalorder %v35, %v40
      %vm42 = vcmp.eq.s32.totalorder %v36, %v40
      %v43 = vsel %vm41, %v31, 0.0
      %v44 = vsel %vm42, %v32, 0.0
      %vm45 = vcmask 31744
      %v46 = vsel %vm45, %v43, 0.0
      %v47 = vsel %vm45, %v44, 0.0
      %v48 = vadd.f32 %v46, %v47
      %49 = vadd.xlane.f32.xlu0 %v48
      %v50 = vpop.xlane.xlu0 %49
      %v51 = vrot.slane %v50, 4
      %v52 = vadd.f32 %v50, %v51
      %v53 = vrot.slane %v52, 2
      %v54 = vadd.f32 %v52, %v53
      %v55 = vrot.slane %v54, 1
      %v56 = vadd.f32 %v54, %v55
      %s57 = vtos %v56
      %s58 = ssub.f32 0.0, %s57
      %s59 = smul.f32 %s58, 0.25
      %s60 = scalar_lea.smem [#allocation6], 0
      %61 = sst [smem:[%s60]] %s59
    $region25: #{pointnet_loss.1} parent=1 // pred_fallthru
      _
    %v62 = vld [vmem:[%s0] sm:$0xff]
    %v63 = vld [vmem:[%s0 + $0x8] sm:$0xff]
    %v64 = vld [vmem:[%s0 + $0x10] sm:$0xff]
    %v65 = vld [vmem:[%s0 + $0x18] sm:$0xff]
    %v66 = vld [vmem:[%s0 + $0x20] sm:$0x1f]
    %v67 = vld [vmem:[%s0 + $0x28] sm:$0x1f]
    %v68 = vld [vmem:[%s0 + $0x30] sm:$0x1f]
    %v69 = vld [vmem:[%s0 + $0x38] sm:$0x1f]
    %v70 = vld [vmem:[%s1] sm:$0xf]
    %v71 = vlaneseq
    %v72 = vshrl.u32 %v71, 7
    %v73 = vadd.s32 %v72, 8
    %v74 = vlaneseq
    %v75 = vshrl.u32 %v74, 7
    %v76 = vsub.s32 0, %v75
    %v77 = vrot.slane %v70, %v76
    %v78 = vlaneseq
    %v79 = vshrl.u32 %v78, 7
    %v80 = vsub.s32 1, %v79
    %v81 = vrot.slane %v70, %v80
    %v82 = vlaneseq
    %v83 = vshrl.u32 %v82, 7
    %v84 = vsub.s32 2, %v83
    %v85 = vrot.slane %v70, %v84
    %v86 = vlaneseq
    %v87 = vshrl.u32 %v86, 7
    %v88 = vsub.s32 3, %v87
    %v89 = vrot.slane %v70, %v88
    %vm90 = vcmp.eq.s32.totalorder %v72, %v77
    %vm91 = vcmp.eq.s32.totalorder %v72, %v81
    %vm92 = vcmp.eq.s32.totalorder %v72, %v85
    %vm93 = vcmp.eq.s32.totalorder %v72, %v89
    %vm94 = vcmp.eq.s32.totalorder %v73, %v77
    %vm95 = vcmp.eq.s32.totalorder %v73, %v81
    %vm96 = vcmp.eq.s32.totalorder %v73, %v85
    %vm97 = vcmp.eq.s32.totalorder %v73, %v89
    %v98 = vsel %vm90, %v62, 0.0
    %v99 = vsel %vm91, %v63, 0.0
    %v100 = vsel %vm92, %v64, 0.0
    %v101 = vsel %vm93, %v65, 0.0
    %v102 = vsel %vm94, %v66, 0.0
    %v103 = vsel %vm95, %v67, 0.0
    %v104 = vsel %vm96, %v68, 0.0
    %v105 = vsel %vm97, %v69, 0.0
    %s106 = sld [smem:[#allocation4]]
    %v107 = vadd.f32 %v98, %v99
    %v108 = vadd.f32 %v107, %v100
    %v109 = vadd.f32 %v108, %v101
    %vm110 = vcmask 1044480
    %v111 = vsel %vm110, %v102, 0.0
    %v112 = vadd.f32 %v109, %v111
    %v113 = vsel %vm110, %v103, 0.0
    %v114 = vadd.f32 %v112, %v113
    %v115 = vsel %vm110, %v104, 0.0
    %v116 = vadd.f32 %v114, %v115
    %v117 = vsel %vm110, %v105, 0.0
    %v118 = vadd.f32 %v116, %v117
    %119 = vadd.xlane.f32.xlu0 %v118
    %v120 = vpop.xlane.xlu0 %119
    %v121 = vrot.slane %v120, 4
    %v122 = vadd.f32 %v120, %v121
    %v123 = vrot.slane %v122, 2
    %v124 = vadd.f32 %v122, %v123
    %v125 = vrot.slane %v124, 1
    %v126 = vadd.f32 %v124, %v125
    %s127 = vtos %v126
    %s128 = ssub.f32 0.0, %s127
    %s129 = smul.f32 %s128, 0.001953125
    %s130 = sadd.f32 %s106, %s129
    %s131 = scalar_lea.smem [#allocation4], 0
    %132 = sst [smem:[%s131]] %s130
    // Predicated region
    $region26: #{pointnet_loss.1} parent=1 // pred_check
      %p133 = pneg %p25
    $region27: #{pointnet_loss.1} parent=1 // pred_check_branch
      %135 = sbr.rel (%p133) target = $region29
    $region28: #{pointnet_loss.1} parent=1 // pred_region
      %v136 = vld [vmem:[%s4] sm:$0xff]
      %v137 = vld [vmem:[%s4 + $0x8] sm:$0xff]
      %v138 = vld [vmem:[%s4 + $0x10] sm:$0xff]
      %v139 = vld [vmem:[%s4 + $0x18] sm:$0xff]
      %v140 = vld [vmem:[%s4 + $0x20] sm:$0xff]
      %v141 = vld [vmem:[%s4 + $0x28] sm:$0xff]
      %v142 = vld [vmem:[%s4 + $0x30] sm:$0xff]
      %v143 = vld [vmem:[%s4 + $0x38] sm:$0xff]
      %vm144 = vcmask 523264
      %v146 = vsel %vm144, %v136, 0
      %v149 = vsel %vm144, %v137, 0
      %v152 = vsel %vm144, %v138, 0
      %v155 = vsel %vm144, %v139, 0
      %v158 = vsel %vm144, %v140, 0
      %v161 = vsel %vm144, %v141, 0
      %v164 = vsel %vm144, %v142, 0
      %v167 = vsel %vm144, %v143, 0
      %169 = vmatprep.subr.mxu0 0.0
      %170 = vmatpush1.xpose.msra.mxu0 0.0
      %171 = vmatprep.subr.mxu0 0.0
      %172 = vmatpush1.xpose.msra.mxu0 0.0
      %173 = vmatprep.subr.mxu0 0.0
      %174 = vmatpush1.xpose.msra.mxu0 0.0
      %175 = vmatprep.subr.mxu0 0.0
      %176 = vmatpush1.xpose.msra.mxu0 0.0
      %177 = vmatprep.subr.mxu0 0.0
      %178 = vmatpush1.xpose.msra.mxu0 0.0
      %179 = vmatprep.subr.mxu0 0.0
      %180 = vmatpush1.xpose.msra.mxu0 0.0
      %181 = vmatprep.subr.mxu0 0.0
      %182 = vmatpush1.xpose.msra.mxu0 0.0
      %183 = vmatprep.subr.mxu0 0.0
      %184 = vmatpush1.xpose.msra.mxu0 0.0
      %185 = vmatprep.subr.mxu0 0.0
      %186 = vmatpush1.xpose.msra.mxu0 %v167
      %187 = vmatprep.subr.mxu0 0.0
      %188 = vmatpush1.xpose.msra.mxu0 %v164
      %189 = vmatprep.subr.mxu0 0.0
      %190 = vmatpush1.xpose.msra.mxu0 %v161
      %191 = vmatprep.subr.mxu0 0.0
      %192 = vmatpush1.xpose.msra.mxu0 %v158
      %193 = vmatprep.subr.mxu0 0.0
      %194 = vmatpush1.xpose.msra.mxu0 %v155
      %195 = vmatprep.subr.mxu0 0.0
      %196 = vmatpush1.xpose.msra.mxu0 %v152
      %197 = vmatprep.subr.mxu0 0.0
      %198 = vmatpush1.xpose.msra.mxu0 %v149
      %199 = vmatprep.subr.mxu0 0.0
      %200 = vmatpush1.xpose.msra.mxu0 %v146
      %201 = vmatprep.subr.mxu0 0.0
      %202 = vmatpush2.xpose.msra.mxu0 0.0
      %203 = vmatprep.subr.mxu0 0.0
      %204 = vmatpush2.xpose.msra.mxu0 0.0
      %205 = vmatprep.subr.mxu0 0.0
      %206 = vmatpush2.xpose.msra.mxu0 0.0
      %207 = vmatprep.subr.mxu0 0.0
      %208 = vmatpush2.xpose.msra.mxu0 0.0
      %209 = vmatprep.subr.mxu0 0.0
      %210 = vmatpush2.xpose.msra.mxu0 0.0
      %211 = vmatprep.subr.mxu0 0.0
      %212 = vmatpush2.xpose.msra.mxu0 0.0
      %213 = vmatprep.subr.mxu0 0.0
      %214 = vmatpush2.xpose.msra.mxu0 0.0
      %215 = vmatprep.subr.mxu0 0.0
      %216 = vmatpush2.xpose.msra.mxu0 0.0
      %217 = vmatprep.subr.mxu0 0.0
      %218 = vmatpush2.xpose.msra.mxu0 0.0
      %219 = vmatprep.subr.mxu0 0.0
      %220 = vmatpush2.xpose.msra.mxu0 0.0
      %221 = vmatprep.subr.mxu0 0.0
      %222 = vmatpush2.xpose.msra.mxu0 0.0
      %223 = vmatprep.subr.mxu0 0.0
      %224 = vmatpush2.xpose.msra.mxu0 0.0
      %225 = vmatprep.subr.mxu0 0.0
      %226 = vmatpush2.xpose.msra.mxu0 0.0
      %227 = vmatprep.subr.mxu0 0.0
      %228 = vmatpush2.xpose.msra.mxu0 0.0
      %229 = vmatprep.subr.mxu0 0.0
      %230 = vmatpush2.xpose.msra.mxu0 0.0
      %231 = vmatprep.subr.mxu0 0.0
      %232 = vmatpush2.xpose.msra.mxu0 0.0
      %233 = vmatprep.mubr.f32.mxu0 0.0
      %234 = vmatmul.mubr.f32.gmra.mxu0 %v146
      %v235 = vpop.f32.mrf.mxu0
      %v236 = vadd.f32 0.0, %v235
      %v237 = vpop.f32.mrf.mxu0
      %238 = vmatprep.mubr.f32.mxu0 0.0
      %239 = vmatmul.mubr.f32.gmra.mxu0 %v149
      %v240 = vpop.f32.mrf.mxu0
      %v241 = vadd.f32 0.0, %v240
      %v242 = vpop.f32.mrf.mxu0
      %243 = vmatprep.mubr.f32.mxu0 0.0
      %244 = vmatmul.mubr.f32.gmra.mxu0 %v152
      %v245 = vpop.f32.mrf.mxu0
      %v246 = vadd.f32 0.0, %v245
      %v247 = vpop.f32.mrf.mxu0
      %248 = vmatprep.mubr.f32.mxu0 0.0
      %249 = vmatmul.mubr.f32.gmra.mxu0 %v155
      %v250 = vpop.f32.mrf.mxu0
      %v251 = vadd.f32 0.0, %v250
      %v252 = vpop.f32.mrf.mxu0
      %253 = vmatprep.mubr.f32.mxu0 0.0
      %254 = vmatmul.mubr.f32.gmra.mxu0 %v158
      %v255 = vpop.f32.mrf.mxu0
      %v256 = vadd.f32 0.0, %v255
      %v257 = vpop.f32.mrf.mxu0
      %258 = vmatprep.mubr.f32.mxu0 0.0
      %259 = vmatmul.mubr.f32.gmra.mxu0 %v161
      %v260 = vpop.f32.mrf.mxu0
      %v261 = vadd.f32 0.0, %v260
      %v262 = vpop.f32.mrf.mxu0
      %263 = vmatprep.mubr.f32.mxu0 0.0
      %264 = vmatmul.mubr.f32.gmra.mxu0 %v164
      %v265 = vpop.f32.mrf.mxu0
      %v266 = vadd.f32 0.0, %v265
      %v267 = vpop.f32.mrf.mxu0
      %268 = vmatprep.mubr.f32.mxu0 0.0
      %269 = vmatmul.mubr.f32.gmra.mxu0 %v167
      %v270 = vpop.f32.mrf.mxu0
      %v271 = vadd.f32 0.0, %v270
      %v272 = vpop.f32.mrf.mxu0
      %273 = vdwg.mxu0
      %v274 = vmul.f32 %v236, %v236
      %v275 = vmul.f32 %v241, %v241
      %v276 = vmul.f32 %v246, %v246
      %v277 = vmul.f32 %v251, %v251
      %v278 = vmul.f32 %v256, %v256
      %v279 = vmul.f32 %v261, %v261
      %v280 = vmul.f32 %v266, %v266
      %v281 = vmul.f32 %v271, %v271
      %v282 = vsel %vm144, %v274, 0.0
      %v283 = vsel %vm144, %v275, 0.0
      %v284 = vadd.f32 %v282, %v283
      %v285 = vsel %vm144, %v276, 0.0
      %v286 = vadd.f32 %v284, %v285
      %v287 = vsel %vm144, %v277, 0.0
      %v288 = vadd.f32 %v286, %v287
      %v289 = vsel %vm144, %v278, 0.0
      %v290 = vadd.f32 %v288, %v289
      %v291 = vsel %vm144, %v279, 0.0
      %v292 = vadd.f32 %v290, %v291
      %v293 = vsel %vm144, %v280, 0.0
      %v294 = vadd.f32 %v292, %v293
      %v295 = vsel %vm144, %v281, 0.0
      %v296 = vadd.f32 %v294, %v295
      %297 = vadd.xlane.f32.xlu0 %v296
      %v298 = vpop.xlane.xlu0 %297
      %v299 = vrot.slane %v298, 4
      %v300 = vadd.f32 %v298, %v299
      %v301 = vrot.slane %v300, 2
      %v302 = vadd.f32 %v300, %v301
      %v303 = vrot.slane %v302, 1
      %v304 = vadd.f32 %v302, %v303
      %s305 = vtos %v304
      %v306 = vmul.f32 %v136, %v136
      %v307 = vmul.f32 %v137, %v137
      %v308 = vmul.f32 %v138, %v138
      %v309 = vmul.f32 %v139, %v139
      %v310 = vmul.f32 %v140, %v140
      %v311 = vmul.f32 %v141, %v141
      %v312 = vmul.f32 %v142, %v142
      %v313 = vmul.f32 %v143, %v143
      %v314 = vsel %vm144, %v306, 0.0
      %v315 = vsel %vm144, %v307, 0.0
      %v316 = vadd.f32 %v314, %v315
      %v317 = vsel %vm144, %v308, 0.0
      %v318 = vadd.f32 %v316, %v317
      %v319 = vsel %vm144, %v309, 0.0
      %v320 = vadd.f32 %v318, %v319
      %v321 = vsel %vm144, %v310, 0.0
      %v322 = vadd.f32 %v320, %v321
      %v323 = vsel %vm144, %v311, 0.0
      %v324 = vadd.f32 %v322, %v323
      %v325 = vsel %vm144, %v312, 0.0
      %v326 = vadd.f32 %v324, %v325
      %v327 = vsel %vm144, %v313, 0.0
      %v328 = vadd.f32 %v326, %v327
      %329 = vadd.xlane.f32.xlu0 %v328
      %v330 = vpop.xlane.xlu0 %329
      %v331 = vrot.slane %v330, 4
      %v332 = vadd.f32 %v330, %v331
      %v333 = vrot.slane %v332, 2
      %v334 = vadd.f32 %v332, %v333
      %v335 = vrot.slane %v334, 1
      %v336 = vadd.f32 %v334, %v335
      %s337 = vtos %v336
      %s338 = smul.f32 %s337, 2.0
      %s339 = ssub.f32 %s305, %s338
      %s340 = sadd.f32 %s339, 64.0
      %s341 = smax.f32 %s340, 0.0
      %v342 = vstv %s341
      %v343 = vrsqrt.pop %v342
      %v344 = vmul.f32 %v342, %v343
      %vm345 = vcmp.eq.f32.partialorder %v342, inf
      %v346 = vsel %vm345, %v342, %v344
      %vm347 = vcmp.eq.f32.partialorder %v342, 0.0
      %v348 = vand.u32 %v342, 2147483648
      %v349 = vsel %vm347, %v348, %v346
      %s350 = vtos %v349
      %s351 = sadd.f32 %s350, 0.0
      %s352 = scalar_lea.vmem %s4, 64
      %v353 = vld [vmem:[%s352] sm:$0xff]
      %v354 = vld [vmem:[%s352 + $0x8] sm:$0xff]
      %v355 = vld [vmem:[%s352 + $0x10] sm:$0xff]
      %v356 = vld [vmem:[%s352 + $0x18] sm:$0xff]
      %v357 = vld [vmem:[%s352 + $0x20] sm:$0xff]
      %v358 = vld [vmem:[%s352 + $0x28] sm:$0xff]
      %v359 = vld [vmem:[%s352 + $0x30] sm:$0xff]
      %v360 = vld [vmem:[%s352 + $0x38] sm:$0xff]
      %v362 = vsel %vm144, %v353, 0
      %v365 = vsel %vm144, %v354, 0
      %v368 = vsel %vm144, %v355, 0
      %v371 = vsel %vm144, %v356, 0
      %v374 = vsel %vm144, %v357, 0
      %v377 = vsel %vm144, %v358, 0
      %v380 = vsel %vm144, %v359, 0
      %v383 = vsel %vm144, %v360, 0
      %385 = vmatprep.subr.mxu0 0.0
      %386 = vmatpush1.xpose.msra.mxu0 0.0
      %387 = vmatprep.subr.mxu0 0.0
      %388 = vmatpush1.xpose.msra.mxu0 0.0
      %389 = vmatprep.subr.mxu0 0.0
      %390 = vmatpush1.xpose.msra.mxu0 0.0
      %391 = vmatprep.subr.mxu0 0.0
      %392 = vmatpush1.xpose.msra.mxu0 0.0
      %393 = vmatprep.subr.mxu0 0.0
      %394 = vmatpush1.xpose.msra.mxu0 0.0
      %395 = vmatprep.subr.mxu0 0.0
      %396 = vmatpush1.xpose.msra.mxu0 0.0
      %397 = vmatprep.subr.mxu0 0.0
      %398 = vmatpush1.xpose.msra.mxu0 0.0
      %399 = vmatprep.subr.mxu0 0.0
      %400 = vmatpush1.xpose.msra.mxu0 0.0
      %401 = vmatprep.subr.mxu0 0.0
      %402 = vmatpush1.xpose.msra.mxu0 %v383
      %403 = vmatprep.subr.mxu0 0.0
      %404 = vmatpush1.xpose.msra.mxu0 %v380
      %405 = vmatprep.subr.mxu0 0.0
      %406 = vmatpush1.xpose.msra.mxu0 %v377
      %407 = vmatprep.subr.mxu0 0.0
      %408 = vmatpush1.xpose.msra.mxu0 %v374
      %409 = vmatprep.subr.mxu0 0.0
      %410 = vmatpush1.xpose.msra.mxu0 %v371
      %411 = vmatprep.subr.mxu0 0.0
      %412 = vmatpush1.xpose.msra.mxu0 %v368
      %413 = vmatprep.subr.mxu0 0.0
      %414 = vmatpush1.xpose.msra.mxu0 %v365
      %415 = vmatprep.subr.mxu0 0.0
      %416 = vmatpush1.xpose.msra.mxu0 %v362
      %417 = vmatprep.subr.mxu0 0.0
      %418 = vmatpush2.xpose.msra.mxu0 0.0
      %419 = vmatprep.subr.mxu0 0.0
      %420 = vmatpush2.xpose.msra.mxu0 0.0
      %421 = vmatprep.subr.mxu0 0.0
      %422 = vmatpush2.xpose.msra.mxu0 0.0
      %423 = vmatprep.subr.mxu0 0.0
      %424 = vmatpush2.xpose.msra.mxu0 0.0
      %425 = vmatprep.subr.mxu0 0.0
      %426 = vmatpush2.xpose.msra.mxu0 0.0
      %427 = vmatprep.subr.mxu0 0.0
      %428 = vmatpush2.xpose.msra.mxu0 0.0
      %429 = vmatprep.subr.mxu0 0.0
      %430 = vmatpush2.xpose.msra.mxu0 0.0
      %431 = vmatprep.subr.mxu0 0.0
      %432 = vmatpush2.xpose.msra.mxu0 0.0
      %433 = vmatprep.subr.mxu0 0.0
      %434 = vmatpush2.xpose.msra.mxu0 0.0
      %435 = vmatprep.subr.mxu0 0.0
      %436 = vmatpush2.xpose.msra.mxu0 0.0
      %437 = vmatprep.subr.mxu0 0.0
      %438 = vmatpush2.xpose.msra.mxu0 0.0
      %439 = vmatprep.subr.mxu0 0.0
      %440 = vmatpush2.xpose.msra.mxu0 0.0
      %441 = vmatprep.subr.mxu0 0.0
      %442 = vmatpush2.xpose.msra.mxu0 0.0
      %443 = vmatprep.subr.mxu0 0.0
      %444 = vmatpush2.xpose.msra.mxu0 0.0
      %445 = vmatprep.subr.mxu0 0.0
      %446 = vmatpush2.xpose.msra.mxu0 0.0
      %447 = vmatprep.subr.mxu0 0.0
      %448 = vmatpush2.xpose.msra.mxu0 0.0
      %449 = vmatprep.mubr.f32.mxu0 0.0
      %450 = vmatmul.mubr.f32.gmra.mxu0 %v362
      %v451 = vpop.f32.mrf.mxu0
      %v452 = vadd.f32 0.0, %v451
      %v453 = vpop.f32.mrf.mxu0
      %454 = vmatprep.mubr.f32.mxu0 0.0
      %455 = vmatmul.mubr.f32.gmra.mxu0 %v365
      %v456 = vpop.f32.mrf.mxu0
      %v457 = vadd.f32 0.0, %v456
      %v458 = vpop.f32.mrf.mxu0
      %459 = vmatprep.mubr.f32.mxu0 0.0
      %460 = vmatmul.mubr.f32.gmra.mxu0 %v368
      %v461 = vpop.f32.mrf.mxu0
      %v462 = vadd.f32 0.0, %v461
      %v463 = vpop.f32.mrf.mxu0
      %464 = vmatprep.mubr.f32.mxu0 0.0
      %465 = vmatmul.mubr.f32.gmra.mxu0 %v371
      %v466 = vpop.f32.mrf.mxu0
      %v467 = vadd.f32 0.0, %v466
      %v468 = vpop.f32.mrf.mxu0
      %469 = vmatprep.mubr.f32.mxu0 0.0
      %470 = vmatmul.mubr.f32.gmra.mxu0 %v374
      %v471 = vpop.f32.mrf.mxu0
      %v472 = vadd.f32 0.0, %v471
      %v473 = vpop.f32.mrf.mxu0
      %474 = vmatprep.mubr.f32.mxu0 0.0
      %475 = vmatmul.mubr.f32.gmra.mxu0 %v377
      %v476 = vpop.f32.mrf.mxu0
      %v477 = vadd.f32 0.0, %v476
      %v478 = vpop.f32.mrf.mxu0
      %479 = vmatprep.mubr.f32.mxu0 0.0
      %480 = vmatmul.mubr.f32.gmra.mxu0 %v380
      %v481 = vpop.f32.mrf.mxu0
      %v482 = vadd.f32 0.0, %v481
      %v483 = vpop.f32.mrf.mxu0
      %484 = vmatprep.mubr.f32.mxu0 0.0
      %485 = vmatmul.mubr.f32.gmra.mxu0 %v383
      %v486 = vpop.f32.mrf.mxu0
      %v487 = vadd.f32 0.0, %v486
      %v488 = vpop.f32.mrf.mxu0
      %489 = vdwg.mxu0
      %v490 = vmul.f32 %v452, %v452
      %v491 = vmul.f32 %v457, %v457
      %v492 = vmul.f32 %v462, %v462
      %v493 = vmul.f32 %v467, %v467
      %v494 = vmul.f32 %v472, %v472
      %v495 = vmul.f32 %v477, %v477
      %v496 = vmul.f32 %v482, %v482
      %v497 = vmul.f32 %v487, %v487
      %v498 = vsel %vm144, %v490, 0.0
      %v499 = vsel %vm144, %v491, 0.0
      %v500 = vadd.f32 %v498, %v499
      %v501 = vsel %vm144, %v492, 0.0
      %v502 = vadd.f32 %v500, %v501
      %v503 = vsel %vm144, %v493, 0.0
      %v504 = vadd.f32 %v502, %v503
      %v505 = vsel %vm144, %v494, 0.0
      %v506 = vadd.f32 %v504, %v505
      %v507 = vsel %vm144, %v495, 0.0
      %v508 = vadd.f32 %v506, %v507
      %v509 = vsel %vm144, %v496, 0.0
      %v510 = vadd.f32 %v508, %v509
      %v511 = vsel %vm144, %v497, 0.0
      %v512 = vadd.f32 %v510, %v511
      %513 = vadd.xlane.f32.xlu0 %v512
      %v514 = vpop.xlane.xlu0 %513
      %v515 = vrot.slane %v514, 4
      %v516 = vadd.f32 %v514, %v515
      %v517 = vrot.slane %v516, 2
      %v518 = vadd.f32 %v516, %v517
      %v519 = vrot.slane %v518, 1
      %v520 = vadd.f32 %v518, %v519
      %s521 = vtos %v520
      %v522 = vmul.f32 %v353, %v353
      %v523 = vmul.f32 %v354, %v354
      %v524 = vmul.f32 %v355, %v355
      %v525 = vmul.f32 %v356, %v356
      %v526 = vmul.f32 %v357, %v357
      %v527 = vmul.f32 %v358, %v358
      %v528 = vmul.f32 %v359, %v359
      %v529 = vmul.f32 %v360, %v360
      %v530 = vsel %vm144, %v522, 0.0
      %v531 = vsel %vm144, %v523, 0.0
      %v532 = vadd.f32 %v530, %v531
      %v533 = vsel %vm144, %v524, 0.0
      %v534 = vadd.f32 %v532, %v533
      %v535 = vsel %vm144, %v525, 0.0
      %v536 = vadd.f32 %v534, %v535
      %v537 = vsel %vm144, %v526, 0.0
      %v538 = vadd.f32 %v536, %v537
      %v539 = vsel %vm144, %v527, 0.0
      %v540 = vadd.f32 %v538, %v539
      %v541 = vsel %vm144, %v528, 0.0
      %v542 = vadd.f32 %v540, %v541
      %v543 = vsel %vm144, %v529, 0.0
      %v544 = vadd.f32 %v542, %v543
      %545 = vadd.xlane.f32.xlu0 %v544
      %v546 = vpop.xlane.xlu0 %545
      %v547 = vrot.slane %v546, 4
      %v548 = vadd.f32 %v546, %v547
      %v549 = vrot.slane %v548, 2
      %v550 = vadd.f32 %v548, %v549
      %v551 = vrot.slane %v550, 1
      %v552 = vadd.f32 %v550, %v551
      %s553 = vtos %v552
      %s554 = smul.f32 %s553, 2.0
      %s555 = ssub.f32 %s521, %s554
      %s556 = sadd.f32 %s555, 64.0
      %s557 = smax.f32 %s556, 0.0
      %v558 = vstv %s557
      %v559 = vrsqrt.pop %v558
      %v560 = vmul.f32 %v558, %v559
      %vm561 = vcmp.eq.f32.partialorder %v558, inf
      %v562 = vsel %vm561, %v558, %v560
      %vm563 = vcmp.eq.f32.partialorder %v558, 0.0
      %v564 = vand.u32 %v558, 2147483648
      %v565 = vsel %vm563, %v564, %v562
      %s566 = vtos %v565
      %s567 = sadd.f32 %s351, %s566
      %s568 = scalar_lea.vmem %s4, 128
      %v569 = vld [vmem:[%s568] sm:$0xff]
      %v570 = vld [vmem:[%s568 + $0x8] sm:$0xff]
      %v571 = vld [vmem:[%s568 + $0x10] sm:$0xff]
      %v572 = vld [vmem:[%s568 + $0x18] sm:$0xff]
      %v573 = vld [vmem:[%s568 + $0x20] sm:$0xff]
      %v574 = vld [vmem:[%s568 + $0x28] sm:$0xff]
      %v575 = vld [vmem:[%s568 + $0x30] sm:$0xff]
      %v576 = vld [vmem:[%s568 + $0x38] sm:$0xff]
      %v578 = vsel %vm144, %v569, 0
      %v581 = vsel %vm144, %v570, 0
      %v584 = vsel %vm144, %v571, 0
      %v587 = vsel %vm144, %v572, 0
      %v590 = vsel %vm144, %v573, 0
      %v593 = vsel %vm144, %v574, 0
      %v596 = vsel %vm144, %v575, 0
      %v599 = vsel %vm144, %v576, 0
      %601 = vmatprep.subr.mxu0 0.0
      %602 = vmatpush1.xpose.msra.mxu0 0.0
      %603 = vmatprep.subr.mxu0 0.0
      %604 = vmatpush1.xpose.msra.mxu0 0.0
      %605 = vmatprep.subr.mxu0 0.0
      %606 = vmatpush1.xpose.msra.mxu0 0.0
      %607 = vmatprep.subr.mxu0 0.0
      %608 = vmatpush1.xpose.msra.mxu0 0.0
      %609 = vmatprep.subr.mxu0 0.0
      %610 = vmatpush1.xpose.msra.mxu0 0.0
      %611 = vmatprep.subr.mxu0 0.0
      %612 = vmatpush1.xpose.msra.mxu0 0.0
      %613 = vmatprep.subr.mxu0 0.0
      %614 = vmatpush1.xpose.msra.mxu0 0.0
      %615 = vmatprep.subr.mxu0 0.0
      %616 = vmatpush1.xpose.msra.mxu0 0.0
      %617 = vmatprep.subr.mxu0 0.0
      %618 = vmatpush1.xpose.msra.mxu0 %v599
      %619 = vmatprep.subr.mxu0 0.0
      %620 = vmatpush1.xpose.msra.mxu0 %v596
      %621 = vmatprep.subr.mxu0 0.0
      %622 = vmatpush1.xpose.msra.mxu0 %v593
      %623 = vmatprep.subr.mxu0 0.0
      %624 = vmatpush1.xpose.msra.mxu0 %v590
      %625 = vmatprep.subr.mxu0 0.0
      %626 = vmatpush1.xpose.msra.mxu0 %v587
      %627 = vmatprep.subr.mxu0 0.0
      %628 = vmatpush1.xpose.msra.mxu0 %v584
      %629 = vmatprep.subr.mxu0 0.0
      %630 = vmatpush1.xpose.msra.mxu0 %v581
      %631 = vmatprep.subr.mxu0 0.0
      %632 = vmatpush1.xpose.msra.mxu0 %v578
      %633 = vmatprep.subr.mxu0 0.0
      %634 = vmatpush2.xpose.msra.mxu0 0.0
      %635 = vmatprep.subr.mxu0 0.0
      %636 = vmatpush2.xpose.msra.mxu0 0.0
      %637 = vmatprep.subr.mxu0 0.0
      %638 = vmatpush2.xpose.msra.mxu0 0.0
      %639 = vmatprep.subr.mxu0 0.0
      %640 = vmatpush2.xpose.msra.mxu0 0.0
      %641 = vmatprep.subr.mxu0 0.0
      %642 = vmatpush2.xpose.msra.mxu0 0.0
      %643 = vmatprep.subr.mxu0 0.0
      %644 = vmatpush2.xpose.msra.mxu0 0.0
      %645 = vmatprep.subr.mxu0 0.0
      %646 = vmatpush2.xpose.msra.mxu0 0.0
      %647 = vmatprep.subr.mxu0 0.0
      %648 = vmatpush2.xpose.msra.mxu0 0.0
      %649 = vmatprep.subr.mxu0 0.0
      %650 = vmatpush2.xpose.msra.mxu0 0.0
      %651 = vmatprep.subr.mxu0 0.0
      %652 = vmatpush2.xpose.msra.mxu0 0.0
      %653 = vmatprep.subr.mxu0 0.0
      %654 = vmatpush2.xpose.msra.mxu0 0.0
      %655 = vmatprep.subr.mxu0 0.0
      %656 = vmatpush2.xpose.msra.mxu0 0.0
      %657 = vmatprep.subr.mxu0 0.0
      %658 = vmatpush2.xpose.msra.mxu0 0.0
      %659 = vmatprep.subr.mxu0 0.0
      %660 = vmatpush2.xpose.msra.mxu0 0.0
      %661 = vmatprep.subr.mxu0 0.0
      %662 = vmatpush2.xpose.msra.mxu0 0.0
      %663 = vmatprep.subr.mxu0 0.0
      %664 = vmatpush2.xpose.msra.mxu0 0.0
      %665 = vmatprep.mubr.f32.mxu0 0.0
      %666 = vmatmul.mubr.f32.gmra.mxu0 %v578
      %v667 = vpop.f32.mrf.mxu0
      %v668 = vadd.f32 0.0, %v667
      %v669 = vpop.f32.mrf.mxu0
      %670 = vmatprep.mubr.f32.mxu0 0.0
      %671 = vmatmul.mubr.f32.gmra.mxu0 %v581
      %v672 = vpop.f32.mrf.mxu0
      %v673 = vadd.f32 0.0, %v672
      %v674 = vpop.f32.mrf.mxu0
      %675 = vmatprep.mubr.f32.mxu0 0.0
      %676 = vmatmul.mubr.f32.gmra.mxu0 %v584
      %v677 = vpop.f32.mrf.mxu0
      %v678 = vadd.f32 0.0, %v677
      %v679 = vpop.f32.mrf.mxu0
      %680 = vmatprep.mubr.f32.mxu0 0.0
      %681 = vmatmul.mubr.f32.gmra.mxu0 %v587
      %v682 = vpop.f32.mrf.mxu0
      %v683 = vadd.f32 0.0, %v682
      %v684 = vpop.f32.mrf.mxu0
      %685 = vmatprep.mubr.f32.mxu0 0.0
      %686 = vmatmul.mubr.f32.gmra.mxu0 %v590
      %v687 = vpop.f32.mrf.mxu0
      %v688 = vadd.f32 0.0, %v687
      %v689 = vpop.f32.mrf.mxu0
      %690 = vmatprep.mubr.f32.mxu0 0.0
      %691 = vmatmul.mubr.f32.gmra.mxu0 %v593
      %v692 = vpop.f32.mrf.mxu0
      %v693 = vadd.f32 0.0, %v692
      %v694 = vpop.f32.mrf.mxu0
      %695 = vmatprep.mubr.f32.mxu0 0.0
      %696 = vmatmul.mubr.f32.gmra.mxu0 %v596
      %v697 = vpop.f32.mrf.mxu0
      %v698 = vadd.f32 0.0, %v697
      %v699 = vpop.f32.mrf.mxu0
      %700 = vmatprep.mubr.f32.mxu0 0.0
      %701 = vmatmul.mubr.f32.gmra.mxu0 %v599
      %v702 = vpop.f32.mrf.mxu0
      %v703 = vadd.f32 0.0, %v702
      %v704 = vpop.f32.mrf.mxu0
      %705 = vdwg.mxu0
      %v706 = vmul.f32 %v668, %v668
      %v707 = vmul.f32 %v673, %v673
      %v708 = vmul.f32 %v678, %v678
      %v709 = vmul.f32 %v683, %v683
      %v710 = vmul.f32 %v688, %v688
      %v711 = vmul.f32 %v693, %v693
      %v712 = vmul.f32 %v698, %v698
      %v713 = vmul.f32 %v703, %v703
      %v714 = vsel %vm144, %v706, 0.0
      %v715 = vsel %vm144, %v707, 0.0
      %v716 = vadd.f32 %v714, %v715
      %v717 = vsel %vm144, %v708, 0.0
      %v718 = vadd.f32 %v716, %v717
      %v719 = vsel %vm144, %v709, 0.0
      %v720 = vadd.f32 %v718, %v719
      %v721 = vsel %vm144, %v710, 0.0
      %v722 = vadd.f32 %v720, %v721
      %v723 = vsel %vm144, %v711, 0.0
      %v724 = vadd.f32 %v722, %v723
      %v725 = vsel %vm144, %v712, 0.0
      %v726 = vadd.f32 %v724, %v725
      %v727 = vsel %vm144, %v713, 0.0
      %v728 = vadd.f32 %v726, %v727
      %729 = vadd.xlane.f32.xlu0 %v728
      %v730 = vpop.xlane.xlu0 %729
      %v731 = vrot.slane %v730, 4
      %v732 = vadd.f32 %v730, %v731
      %v733 = vrot.slane %v732, 2
      %v734 = vadd.f32 %v732, %v733
      %v735 = vrot.slane %v734, 1
      %v736 = vadd.f32 %v734, %v735
      %s737 = vtos %v736
      %v738 = vmul.f32 %v569, %v569
      %v739 = vmul.f32 %v570, %v570
      %v740 = vmul.f32 %v571, %v571
      %v741 = vmul.f32 %v572, %v572
      %v742 = vmul.f32 %v573, %v573
      %v743 = vmul.f32 %v574, %v574
      %v744 = vmul.f32 %v575, %v575
      %v745 = vmul.f32 %v576, %v576
      %v746 = vsel %vm144, %v738, 0.0
      %v747 = vsel %vm144, %v739, 0.0
      %v748 = vadd.f32 %v746, %v747
      %v749 = vsel %vm144, %v740, 0.0
      %v750 = vadd.f32 %v748, %v749
      %v751 = vsel %vm144, %v741, 0.0
      %v752 = vadd.f32 %v750, %v751
      %v753 = vsel %vm144, %v742, 0.0
      %v754 = vadd.f32 %v752, %v753
      %v755 = vsel %vm144, %v743, 0.0
      %v756 = vadd.f32 %v754, %v755
      %v757 = vsel %vm144, %v744, 0.0
      %v758 = vadd.f32 %v756, %v757
      %v759 = vsel %vm144, %v745, 0.0
      %v760 = vadd.f32 %v758, %v759
      %761 = vadd.xlane.f32.xlu0 %v760
      %v762 = vpop.xlane.xlu0 %761
      %v763 = vrot.slane %v762, 4
      %v764 = vadd.f32 %v762, %v763
      %v765 = vrot.slane %v764, 2
      %v766 = vadd.f32 %v764, %v765
      %v767 = vrot.slane %v766, 1
      %v768 = vadd.f32 %v766, %v767
      %s769 = vtos %v768
      %s770 = smul.f32 %s769, 2.0
      %s771 = ssub.f32 %s737, %s770
      %s772 = sadd.f32 %s771, 64.0
      %s773 = smax.f32 %s772, 0.0
      %v774 = vstv %s773
      %v775 = vrsqrt.pop %v774
      %v776 = vmul.f32 %v774, %v775
      %vm777 = vcmp.eq.f32.partialorder %v774, inf
      %v778 = vsel %vm777, %v774, %v776
      %vm779 = vcmp.eq.f32.partialorder %v774, 0.0
      %v780 = vand.u32 %v774, 2147483648
      %v781 = vsel %vm779, %v780, %v778
      %s782 = vtos %v781
      %s783 = sadd.f32 %s567, %s782
      %s784 = scalar_lea.vmem %s4, 192
      %v785 = vld [vmem:[%s784] sm:$0xff]
      %v786 = vld [vmem:[%s784 + $0x8] sm:$0xff]
      %v787 = vld [vmem:[%s784 + $0x10] sm:$0xff]
      %v788 = vld [vmem:[%s784 + $0x18] sm:$0xff]
      %v789 = vld [vmem:[%s784 + $0x20] sm:$0xff]
      %v790 = vld [vmem:[%s784 + $0x28] sm:$0xff]
      %v791 = vld [vmem:[%s784 + $0x30] sm:$0xff]
      %v792 = vld [vmem:[%s784 + $0x38] sm:$0xff]
      %v794 = vsel %vm144, %v785, 0
      %v797 = vsel %vm144, %v786, 0
      %v800 = vsel %vm144, %v787, 0
      %v803 = vsel %vm144, %v788, 0
      %v806 = vsel %vm144, %v789, 0
      %v809 = vsel %vm144, %v790, 0
      %v812 = vsel %vm144, %v791, 0
      %v815 = vsel %vm144, %v792, 0
      %817 = vmatprep.subr.mxu0 0.0
      %818 = vmatpush1.xpose.msra.mxu0 0.0
      %819 = vmatprep.subr.mxu0 0.0
      %820 = vmatpush1.xpose.msra.mxu0 0.0
      %821 = vmatprep.subr.mxu0 0.0
      %822 = vmatpush1.xpose.msra.mxu0 0.0
      %823 = vmatprep.subr.mxu0 0.0
      %824 = vmatpush1.xpose.msra.mxu0 0.0
      %825 = vmatprep.subr.mxu0 0.0
      %826 = vmatpush1.xpose.msra.mxu0 0.0
      %827 = vmatprep.subr.mxu0 0.0
      %828 = vmatpush1.xpose.msra.mxu0 0.0
      %829 = vmatprep.subr.mxu0 0.0
      %830 = vmatpush1.xpose.msra.mxu0 0.0
      %831 = vmatprep.subr.mxu0 0.0
      %832 = vmatpush1.xpose.msra.mxu0 0.0
      %833 = vmatprep.subr.mxu0 0.0
      %834 = vmatpush1.xpose.msra.mxu0 %v815
      %835 = vmatprep.subr.mxu0 0.0
      %836 = vmatpush1.xpose.msra.mxu0 %v812
      %837 = vmatprep.subr.mxu0 0.0
      %838 = vmatpush1.xpose.msra.mxu0 %v809
      %839 = vmatprep.subr.mxu0 0.0
      %840 = vmatpush1.xpose.msra.mxu0 %v806
      %841 = vmatprep.subr.mxu0 0.0
      %842 = vmatpush1.xpose.msra.mxu0 %v803
      %843 = vmatprep.subr.mxu0 0.0
      %844 = vmatpush1.xpose.msra.mxu0 %v800
      %845 = vmatprep.subr.mxu0 0.0
      %846 = vmatpush1.xpose.msra.mxu0 %v797
      %847 = vmatprep.subr.mxu0 0.0
      %848 = vmatpush1.xpose.msra.mxu0 %v794
      %849 = vmatprep.subr.mxu0 0.0
      %850 = vmatpush2.xpose.msra.mxu0 0.0
      %851 = vmatprep.subr.mxu0 0.0
      %852 = vmatpush2.xpose.msra.mxu0 0.0
      %853 = vmatprep.subr.mxu0 0.0
      %854 = vmatpush2.xpose.msra.mxu0 0.0
      %855 = vmatprep.subr.mxu0 0.0
      %856 = vmatpush2.xpose.msra.mxu0 0.0
      %857 = vmatprep.subr.mxu0 0.0
      %858 = vmatpush2.xpose.msra.mxu0 0.0
      %859 = vmatprep.subr.mxu0 0.0
      %860 = vmatpush2.xpose.msra.mxu0 0.0
      %861 = vmatprep.subr.mxu0 0.0
      %862 = vmatpush2.xpose.msra.mxu0 0.0
      %863 = vmatprep.subr.mxu0 0.0
      %864 = vmatpush2.xpose.msra.mxu0 0.0
      %865 = vmatprep.subr.mxu0 0.0
      %866 = vmatpush2.xpose.msra.mxu0 0.0
      %867 = vmatprep.subr.mxu0 0.0
      %868 = vmatpush2.xpose.msra.mxu0 0.0
      %869 = vmatprep.subr.mxu0 0.0
      %870 = vmatpush2.xpose.msra.mxu0 0.0
      %871 = vmatprep.subr.mxu0 0.0
      %872 = vmatpush2.xpose.msra.mxu0 0.0
      %873 = vmatprep.subr.mxu0 0.0
      %874 = vmatpush2.xpose.msra.mxu0 0.0
      %875 = vmatprep.subr.mxu0 0.0
      %876 = vmatpush2.xpose.msra.mxu0 0.0
      %877 = vmatprep.subr.mxu0 0.0
      %878 = vmatpush2.xpose.msra.mxu0 0.0
      %879 = vmatprep.subr.mxu0 0.0
      %880 = vmatpush2.xpose.msra.mxu0 0.0
      %881 = vmatprep.mubr.f32.mxu0 0.0
      %882 = vmatmul.mubr.f32.gmra.mxu0 %v794
      %v883 = vpop.f32.mrf.mxu0
      %v884 = vadd.f32 0.0, %v883
      %v885 = vpop.f32.mrf.mxu0
      %886 = vmatprep.mubr.f32.mxu0 0.0
      %887 = vmatmul.mubr.f32.gmra.mxu0 %v797
      %v888 = vpop.f32.mrf.mxu0
      %v889 = vadd.f32 0.0, %v888
      %v890 = vpop.f32.mrf.mxu0
      %891 = vmatprep.mubr.f32.mxu0 0.0
      %892 = vmatmul.mubr.f32.gmra.mxu0 %v800
      %v893 = vpop.f32.mrf.mxu0
      %v894 = vadd.f32 0.0, %v893
      %v895 = vpop.f32.mrf.mxu0
      %896 = vmatprep.mubr.f32.mxu0 0.0
      %897 = vmatmul.mubr.f32.gmra.mxu0 %v803
      %v898 = vpop.f32.mrf.mxu0
      %v899 = vadd.f32 0.0, %v898
      %v900 = vpop.f32.mrf.mxu0
      %901 = vmatprep.mubr.f32.mxu0 0.0
      %902 = vmatmul.mubr.f32.gmra.mxu0 %v806
      %v903 = vpop.f32.mrf.mxu0
      %v904 = vadd.f32 0.0, %v903
      %v905 = vpop.f32.mrf.mxu0
      %906 = vmatprep.mubr.f32.mxu0 0.0
      %907 = vmatmul.mubr.f32.gmra.mxu0 %v809
      %v908 = vpop.f32.mrf.mxu0
      %v909 = vadd.f32 0.0, %v908
      %v910 = vpop.f32.mrf.mxu0
      %911 = vmatprep.mubr.f32.mxu0 0.0
      %912 = vmatmul.mubr.f32.gmra.mxu0 %v812
      %v913 = vpop.f32.mrf.mxu0
      %v914 = vadd.f32 0.0, %v913
      %v915 = vpop.f32.mrf.mxu0
      %916 = vmatprep.mubr.f32.mxu0 0.0
      %917 = vmatmul.mubr.f32.gmra.mxu0 %v815
      %v918 = vpop.f32.mrf.mxu0
      %v919 = vadd.f32 0.0, %v918
      %v920 = vpop.f32.mrf.mxu0
      %921 = vdwg.mxu0
      %v922 = vmul.f32 %v884, %v884
      %v923 = vmul.f32 %v889, %v889
      %v924 = vmul.f32 %v894, %v894
      %v925 = vmul.f32 %v899, %v899
      %v926 = vmul.f32 %v904, %v904
      %v927 = vmul.f32 %v909, %v909
      %v928 = vmul.f32 %v914, %v914
      %v929 = vmul.f32 %v919, %v919
      %v930 = vsel %vm144, %v922, 0.0
      %v931 = vsel %vm144, %v923, 0.0
      %v932 = vadd.f32 %v930, %v931
      %v933 = vsel %vm144, %v924, 0.0
      %v934 = vadd.f32 %v932, %v933
      %v935 = vsel %vm144, %v925, 0.0
      %v936 = vadd.f32 %v934, %v935
      %v937 = vsel %vm144, %v926, 0.0
      %v938 = vadd.f32 %v936, %v937
      %v939 = vsel %vm144, %v927, 0.0
      %v940 = vadd.f32 %v938, %v939
      %v941 = vsel %vm144, %v928, 0.0
      %v942 = vadd.f32 %v940, %v941
      %v943 = vsel %vm144, %v929, 0.0
      %v944 = vadd.f32 %v942, %v943
      %945 = vadd.xlane.f32.xlu0 %v944
      %v946 = vpop.xlane.xlu0 %945
      %v947 = vrot.slane %v946, 4
      %v948 = vadd.f32 %v946, %v947
      %v949 = vrot.slane %v948, 2
      %v950 = vadd.f32 %v948, %v949
      %v951 = vrot.slane %v950, 1
      %v952 = vadd.f32 %v950, %v951
      %s953 = vtos %v952
      %v954 = vmul.f32 %v785, %v785
      %v955 = vmul.f32 %v786, %v786
      %v956 = vmul.f32 %v787, %v787
      %v957 = vmul.f32 %v788, %v788
      %v958 = vmul.f32 %v789, %v789
      %v959 = vmul.f32 %v790, %v790
      %v960 = vmul.f32 %v791, %v791
      %v961 = vmul.f32 %v792, %v792
      %v962 = vsel %vm144, %v954, 0.0
      %v963 = vsel %vm144, %v955, 0.0
      %v964 = vadd.f32 %v962, %v963
      %v965 = vsel %vm144, %v956, 0.0
      %v966 = vadd.f32 %v964, %v965
      %v967 = vsel %vm144, %v957, 0.0
      %v968 = vadd.f32 %v966, %v967
      %v969 = vsel %vm144, %v958, 0.0
      %v970 = vadd.f32 %v968, %v969
      %v971 = vsel %vm144, %v959, 0.0
      %v972 = vadd.f32 %v970, %v971
      %v973 = vsel %vm144, %v960, 0.0
      %v974 = vadd.f32 %v972, %v973
      %v975 = vsel %vm144, %v961, 0.0
      %v976 = vadd.f32 %v974, %v975
      %977 = vadd.xlane.f32.xlu0 %v976
      %v978 = vpop.xlane.xlu0 %977
      %v979 = vrot.slane %v978, 4
      %v980 = vadd.f32 %v978, %v979
      %v981 = vrot.slane %v980, 2
      %v982 = vadd.f32 %v980, %v981
      %v983 = vrot.slane %v982, 1
      %v984 = vadd.f32 %v982, %v983
      %s985 = vtos %v984
      %s986 = smul.f32 %s985, 2.0
      %s987 = ssub.f32 %s953, %s986
      %s988 = sadd.f32 %s987, 64.0
      %s989 = smax.f32 %s988, 0.0
      %v990 = vstv %s989
      %v991 = vrsqrt.pop %v990
      %v992 = vmul.f32 %v990, %v991
      %vm993 = vcmp.eq.f32.partialorder %v990, inf
      %v994 = vsel %vm993, %v990, %v992
      %vm995 = vcmp.eq.f32.partialorder %v990, 0.0
      %v996 = vand.u32 %v990, 2147483648
      %v997 = vsel %vm995, %v996, %v994
      %s998 = vtos %v997
      %s999 = sadd.f32 %s783, %s998
      %s1000 = smul.f32 %s999, 0.25
      %s1001 = sld [smem:[#allocation4]]
      %s1002 = sld [smem:[#allocation6]]
      %s1003 = smul.f32 %s1002, 0.0
      %s1004 = sadd.f32 %s1001, %s1003
      %s1005 = smul.f32 %s1000, 0.001
      %s1006 = sadd.f32 %s1004, %s1005
      %s1007 = scalar_lea.smem [#allocation2], 0
      %1008 = sst [smem:[%s1007]] %s1006
    $region29: #{pointnet_loss.1} parent=1 // pred_fallthru
      _
    // Predicated region
    $region30: #{pointnet_loss.1} parent=1 // pred_check
      _
    $region31: #{pointnet_loss.1} parent=1 // pred_check_branch
      %1010 = sbr.rel (0) target = $region33
    $region32: #{pointnet_loss.1} parent=1 // pred_region
      %s1012 = ssub.s32 16, 16
      %1013 = vsyncadd [#allocation3], %s1012
      %1016 = dma.smem_to_hbm [#allocation2], 16, %s5, [#allocation3]
    $region33: #{pointnet_loss.1} parent=1 // pred_fallthru
      _
    // Predicated region
    $region34: #{pointnet_loss.1} parent=1 // pred_check
      _
    $region35: #{pointnet_loss.1} parent=1 // pred_check_branch
      %1018 = sbr.rel (0) target = $region37
    $region36: #{pointnet_loss.1} parent=1 // pred_region
      %s1020 = ssub.s32 16, 16
      %1021 = vsyncadd [#allocation5], %s1020
      %1024 = dma.smem_to_hbm [#allocation4], 16, %s6, [#allocation5]
    $region37: #{pointnet_loss.1} parent=1 // pred_fallthru
      _
    // Predicated region
    $region38: #{pointnet_loss.1} parent=1 // pred_check
      _
    $region39: #{pointnet_loss.1} parent=1 // pred_check_branch
      %1026 = sbr.rel (0) target = $region41
    $region40: #{pointnet_loss.1} parent=1 // pred_region
      %s1028 = ssub.s32 16, 16
      %1029 = vsyncadd [#allocation5], %s1028
      %1032 = dma.smem_to_hbm [#allocation6], 16, %s7, [#allocation5]
    $region41: #{pointnet_loss.1} parent=1 // pred_fallthru
      _
    // Predicated region
    $region42: #{pointnet_loss.1} parent=1 // pred_check
      _
    $region43: #{pointnet_loss.1} parent=1 // pred_check_branch
      %1034 = sbr.rel (0) target = $region45
    $region44: #{pointnet_loss.1} parent=1 // pred_region
      %1035 = dma.done [#allocation3], 16
    $region45: #{pointnet_loss.1} parent=1 // pred_fallthru
      _
    // Predicated region
    $region46: #{pointnet_loss.1} parent=1 // pred_check
      _
    $region47: #{pointnet_loss.1} parent=1 // pred_check_branch
      %1037 = sbr.rel (0) target = $region49
    $region48: #{pointnet_loss.1} parent=1 // pred_region
      %1038 = dma.done [#allocation5], 16
    $region49: #{pointnet_loss.1} parent=1 // pred_fallthru
      _
    // Predicated region
    $region50: #{pointnet_loss.1} parent=1 // pred_check
      _
    $region51: #{pointnet_loss.1} parent=1 // pred_check_branch
      %1040 = sbr.rel (0) target = $region53
    $region52: #{pointnet_loss.1} parent=1 // pred_region
      %1041 = dma.done [#allocation5], 16
    $region53: #{pointnet_loss.1} parent=1 // pred_fallthru
      _
    %1042 = sfence
    %1043 = vsyncpa [#allocation3], 1
    %1044 = vsyncpa [#allocation5], 1

</llo_original>
